<compile_context>
chip_gen: v6e
topology: v6e:2x2x1
jax: 0.10.0
libtpu: 0.0.40
codegen_flags: <defaults>
</compile_context>

<pallas_src>
import jax
import jax.numpy as jnp
from jax.experimental import pallas as pl
from jax.experimental.pallas import tpu as pltpu

# --- model hyperparameters (small, consistent with the module) -------------
NUM_FEATURES = 32            # model.in_channels (small synthetic value)
HALF = NUM_FEATURES // 2     # half_in_size = 16
LAYER_WIDTH = 20
NUM_CLASSES = 5
BN_EPS = 1e-5

# --- padded / packed sizes (lane-aligned) -----------------------------------
P = 128                      # padded layer width  (one full lane group)
C_PAD = 128                  # padded num_classes  (lane-dense output store)


def _round_up(n, m):
    return ((n + m - 1) // m) * m


# ---------------------------------------------------------------------------
# Kernel: one batch tile, all weights resident.  6 dots total, no in-kernel
# weight slicing, all lane slices at 128-aligned offsets.
# ---------------------------------------------------------------------------
def spinal_kernel(x_ref,
                  wf_ref, b1_ref,
                  wp2_ref, b2_ref,
                  wp3_ref, b3_ref,
                  wp4_ref, b4_ref,
                  wo_ref, bo_ref,
                  o_ref):
    x = x_ref[...]                                              # (TB, 32) f32

    # All four "feat half" contributions in a single MXU push.
    feat = jnp.dot(x, wf_ref[...],
                   preferred_element_type=jnp.float32)          # (TB, 4*P)

    # Serial spinal chain (BN already folded into weights/bias; ReLU after).
    x1 = jnp.maximum(feat[:, 0 * P:1 * P] + b1_ref[...], 0.0)
    x2 = jnp.maximum(feat[:, 1 * P:2 * P]
                     + jnp.dot(x1, wp2_ref[...],
                               preferred_element_type=jnp.float32)
                     + b2_ref[...], 0.0)
    x3 = jnp.maximum(feat[:, 2 * P:3 * P]
                     + jnp.dot(x2, wp3_ref[...],
                               preferred_element_type=jnp.float32)
                     + b3_ref[...], 0.0)
    x4 = jnp.maximum(feat[:, 3 * P:4 * P]
                     + jnp.dot(x3, wp4_ref[...],
                               preferred_element_type=jnp.float32)
                     + b4_ref[...], 0.0)

    # fc_out as a single dot on the lane-concatenated activations (128-aligned
    # blocks -> pure vreg arrangement, no cross-lane shuffles).
    acts = jnp.concatenate([x1, x2, x3, x4], axis=1)            # (TB, 4*P)
    out = jnp.dot(acts, wo_ref[...],
                  preferred_element_type=jnp.float32) + bo_ref[...]
    o_ref[...] = out.astype(o_ref.dtype)                        # lane-dense store


# ---------------------------------------------------------------------------
# Wrapper-side parameter packing: fold BN, split concat weights, zero-pad to
# lane/sublane-aligned shapes.  Done once, outside the kernel.
# ---------------------------------------------------------------------------
def pack_params(p):
    def fuse(w, b, s, t):
        return w * s, b * s + t                                 # eval-mode BN fold

    w1, b1 = fuse(p["w1"], p["b1"], p["s1"], p["t1"])           # (16,20), (1,20)
    w2, b2 = fuse(p["w2"], p["b2"], p["s2"], p["t2"])           # (36,20), (1,20)
    w3, b3 = fuse(p["w3"], p["b3"], p["s3"], p["t3"])
    w4, b4 = fuse(p["w4"], p["b4"], p["s4"], p["t4"])

    # Block-structured feat weight: rows 0:16 take x[:, :16], rows 16:32 take
    # x[:, 16:].  Column block j holds layer (j+1)'s feat half.
    wf = jnp.zeros((NUM_FEATURES, 4 * P), jnp.float32)
    wf = wf.at[0:HALF,  0 * P:0 * P + LAYER_WIDTH].set(w1)               # layer1 <- xa
    wf = wf.at[HALF:,   1 * P:1 * P + LAYER_WIDTH].set(w2[:HALF, :])     # layer2 <- xb
    wf = wf.at[0:HALF,  2 * P:2 * P + LAYER_WIDTH].set(w3[:HALF, :])     # layer3 <- xa
    wf = wf.at[HALF:,   3 * P:3 * P + LAYER_WIDTH].set(w4[:HALF, :])     # layer4 <- xb

    def pad_prev(w):                                            # (20,20) -> (P,P)
        return jnp.zeros((P, P), jnp.float32).at[:LAYER_WIDTH, :LAYER_WIDTH].set(w)

    def pad_bias(b):                                            # (1,20) -> (1,P)
        return jnp.zeros((1, P), jnp.float32).at[:, :LAYER_WIDTH].set(b)

    # fc_out: block j of rows maps layer (j+1)'s activations; pad classes to 128.
    wo = jnp.zeros((4 * P, C_PAD), jnp.float32)
    for j in range(4):
        wo = wo.at[j * P:j * P + LAYER_WIDTH, :NUM_CLASSES].set(
            p["wo"][j * LAYER_WIDTH:(j + 1) * LAYER_WIDTH, :])
    bo = jnp.zeros((1, C_PAD), jnp.float32).at[:, :NUM_CLASSES].set(p["bo"])

    return {
        "wf": wf, "b1": pad_bias(b1),
        "wp2": pad_prev(w2[HALF:, :]), "b2": pad_bias(b2),
        "wp3": pad_prev(w3[HALF:, :]), "b3": pad_bias(b3),
        "wp4": pad_prev(w4[HALF:, :]), "b4": pad_bias(b4),
        "wo": wo, "bo": bo,
    }


def efficient_spinal_net(x, packed, *, tb=256):
    """x: (B, NUM_FEATURES) float32.  packed: output of pack_params()."""
    B = x.shape[0]
    tb = min(tb, max(8, _round_up(B, 8)))         # small batches: one tile
    b_pad = _round_up(B, tb)
    if b_pad != B:
        x = jnp.pad(x, ((0, b_pad - B), (0, 0)))
    grid = (pl.cdiv(b_pad, tb),)

    const = lambda i: (0, 0)                      # weights stay VMEM-resident
    in_specs = [
        pl.BlockSpec((tb, NUM_FEATURES), lambda i: (i, 0)),          # x
        pl.BlockSpec((NUM_FEATURES, 4 * P), const),                  # wf
        pl.BlockSpec((1, P), const),                                 # b1
        pl.BlockSpec((P, P), const),                                 # wp2
        pl.BlockSpec((1, P), const),                                 # b2
        pl.BlockSpec((P, P), const),                                 # wp3
        pl.BlockSpec((1, P), const),                                 # b3
        pl.BlockSpec((P, P), const),                                 # wp4
        pl.BlockSpec((1, P), const),                                 # b4
        pl.BlockSpec((4 * P, C_PAD), const),                         # wo
        pl.BlockSpec((1, C_PAD), const),                             # bo
    ]
    out_specs = pl.BlockSpec((tb, C_PAD), lambda i: (i, 0))

    out = pl.pallas_call(
        spinal_kernel,
        out_shape=jax.ShapeDtypeStruct((b_pad, C_PAD), jnp.float32),
        grid=grid,
        in_specs=in_specs,
        out_specs=out_specs,
        compiler_params=pltpu.CompilerParams(
            dimension_semantics=("parallel",)),   # v7x: split batch across TCs
    )(x,
      packed["wf"], packed["b1"],
      packed["wp2"], packed["b2"],
      packed["wp3"], packed["b3"],
      packed["wp4"], packed["b4"],
      packed["wo"], packed["bo"])

    return out[:B, :NUM_CLASSES]


# ---------------------------------------------------------------------------
# Synthetic parameters + pure-JAX reference (mirrors the PyTorch eval forward).
# ---------------------------------------------------------------------------
def init_params(key):
    ks = jax.random.split(key, 32)
    p = {}

    def linear(kw, kb, fan_in, fan_out):
        w = jax.random.normal(kw, (fan_in, fan_out), jnp.float32) * 0.1
        b = jax.random.normal(kb, (1, fan_out), jnp.float32) * 0.1
        return w, b

    def bn_affine(kg, kb, km, kv, n):
        gamma = 1.0 + 0.1 * jax.random.normal(kg, (1, n), jnp.float32)
        beta = 0.1 * jax.random.normal(kb, (1, n), jnp.float32)
        running_mean = 0.1 * jax.random.normal(km, (1, n), jnp.float32)
        running_var = 1.0 + 0.1 * jnp.abs(jax.random.normal(kv, (1, n), jnp.float32))
        scale = gamma / jnp.sqrt(running_var + BN_EPS)
        shift = beta - running_mean * scale
        return scale, shift

    fan_ins = [HALF, HALF + LAYER_WIDTH, HALF + LAYER_WIDTH, HALF + LAYER_WIDTH]
    k = 0
    for i, fan_in in enumerate(fan_ins, start=1):
        w, b = linear(ks[k], ks[k + 1], fan_in, LAYER_WIDTH)
        s, t = bn_affine(ks[k + 2], ks[k + 3], ks[k + 4], ks[k + 5], LAYER_WIDTH)
        p[f"w{i}"], p[f"b{i}"], p[f"s{i}"], p[f"t{i}"] = w, b, s, t
        k += 6
    p["wo"], p["bo"] = linear(ks[k], ks[k + 1], 4 * LAYER_WIDTH, NUM_CLASSES)
    return p


def reference_forward(x, p):
    xa = x[:, 0:HALF]
    xb = x[:, HALF:2 * HALF]

    def layer(inp, i):
        h = inp @ p[f"w{i}"] + p[f"b{i}"]
        h = h * p[f"s{i}"] + p[f"t{i}"]
        return jnp.maximum(h, 0.0)

    x1 = layer(xa, 1)
    x2 = layer(jnp.concatenate([xb, x1], axis=1), 2)
    x3 = layer(jnp.concatenate([xa, x2], axis=1), 3)
    x4 = layer(jnp.concatenate([xb, x3], axis=1), 4)
    cat = jnp.concatenate([x1, x2, x3, x4], axis=1)
    return cat @ p["wo"] + p["bo"]


if __name__ == "__main__":
    key = jax.random.PRNGKey(0)
    kx, kp = jax.random.split(key)
    B = 24
    x = jax.random.normal(kx, (B, NUM_FEATURES), jnp.float32)
    params = init_params(kp)
    packed = pack_params(params)

    # tb=8 exercises the multi-step batch grid at this tiny demo size;
    # for real workloads keep the default tb=256.
    out = efficient_spinal_net(x, packed, tb=8)
    out = jax.block_until_ready(out)

    ref = reference_forward(x, params)
    assert out.shape == (B, NUM_CLASSES)
    assert jnp.allclose(out, ref, atol=1e-4, rtol=1e-4), "mismatch vs JAX reference"

    print("KERNEL_OK")
</pallas_src>

<mosaic_0001>
module attributes {stable_mosaic.version = 11 : i64} {
  func.func @spinal_kernel(%arg0: i32, %arg1: memref<8x32xf32, #tpu.memory_space<vmem>>, %arg2: memref<32x512xf32, #tpu.memory_space<vmem>>, %arg3: memref<1x128xf32, #tpu.memory_space<vmem>>, %arg4: memref<128x128xf32, #tpu.memory_space<vmem>>, %arg5: memref<1x128xf32, #tpu.memory_space<vmem>>, %arg6: memref<128x128xf32, #tpu.memory_space<vmem>>, %arg7: memref<1x128xf32, #tpu.memory_space<vmem>>, %arg8: memref<128x128xf32, #tpu.memory_space<vmem>>, %arg9: memref<1x128xf32, #tpu.memory_space<vmem>>, %arg10: memref<512x128xf32, #tpu.memory_space<vmem>>, %arg11: memref<1x128xf32, #tpu.memory_space<vmem>>, %arg12: memref<8x128xf32, #tpu.memory_space<vmem>>) attributes {dimension_semantics = [#tpu.dimension_semantics<parallel>], iteration_bounds = array<i64: 3>, scalar_prefetch = 0 : i64, scratch_operands = 0 : i64, tpu.core_type = #tpu.core_type<tc>, window_params = [{transform_indices = @transform_0, window_bounds = array<i64: 8, 32>}, {pipeline_mode = #tpu.pipeline_mode<synchronous>, transform_indices = @transform_1, window_bounds = array<i64: 32, 512>}, {pipeline_mode = #tpu.pipeline_mode<synchronous>, transform_indices = @transform_2, window_bounds = array<i64: 1, 128>}, {pipeline_mode = #tpu.pipeline_mode<synchronous>, transform_indices = @transform_3, window_bounds = array<i64: 128, 128>}, {pipeline_mode = #tpu.pipeline_mode<synchronous>, transform_indices = @transform_4, window_bounds = array<i64: 1, 128>}, {pipeline_mode = #tpu.pipeline_mode<synchronous>, transform_indices = @transform_5, window_bounds = array<i64: 128, 128>}, {pipeline_mode = #tpu.pipeline_mode<synchronous>, transform_indices = @transform_6, window_bounds = array<i64: 1, 128>}, {pipeline_mode = #tpu.pipeline_mode<synchronous>, transform_indices = @transform_7, window_bounds = array<i64: 128, 128>}, {pipeline_mode = #tpu.pipeline_mode<synchronous>, transform_indices = @transform_8, window_bounds = array<i64: 1, 128>}, {pipeline_mode = #tpu.pipeline_mode<synchronous>, transform_indices = @transform_9, window_bounds = array<i64: 512, 128>}, {pipeline_mode = #tpu.pipeline_mode<synchronous>, transform_indices = @transform_10, window_bounds = array<i64: 1, 128>}, {transform_indices = @transform_11, window_bounds = array<i64: 8, 128>}]} {
    %c0 = arith.constant 0 : index
    %c0_0 = arith.constant 0 : index
    %0 = vector.load %arg1[%c0, %c0_0] : memref<8x32xf32, #tpu.memory_space<vmem>>, vector<8x32xf32>
    %c0_1 = arith.constant 0 : index
    %c0_2 = arith.constant 0 : index
    %1 = vector.load %arg2[%c0_1, %c0_2] : memref<32x512xf32, #tpu.memory_space<vmem>>, vector<32x512xf32>
    %cst = arith.constant dense<0.000000e+00> : vector<8x512xf32>
    %2 = tpu.matmul %0, %1, %cst {dimension_numbers = #tpu.dot_dimension_numbers<[1], [0], [0], [1], [0, 0, 1, 1], [], []>} : vector<8x32xf32>, vector<32x512xf32>, vector<8x512xf32> -> vector<8x512xf32>
    %3 = vector.extract_strided_slice %2 {offsets = [0, 0], sizes = [8, 128], strides = [1, 1]} : vector<8x512xf32> to vector<8x128xf32>
    %c0_3 = arith.constant 0 : index
    %c0_4 = arith.constant 0 : index
    %4 = vector.load %arg3[%c0_3, %c0_4] : memref<1x128xf32, #tpu.memory_space<vmem>>, vector<1x128xf32>
    %5 = vector.broadcast %4 : vector<1x128xf32> to vector<8x128xf32>
    %6 = arith.addf %3, %5 : vector<8x128xf32>
    %cst_5 = arith.constant 0.000000e+00 : f32
    %7 = vector.broadcast %cst_5 : f32 to vector<8x128xf32>
    %8 = arith.maximumf %6, %7 : vector<8x128xf32>
    %9 = vector.extract_strided_slice %2 {offsets = [0, 128], sizes = [8, 128], strides = [1, 1]} : vector<8x512xf32> to vector<8x128xf32>
    %c0_6 = arith.constant 0 : index
    %c0_7 = arith.constant 0 : index
    %10 = vector.load %arg4[%c0_6, %c0_7] : memref<128x128xf32, #tpu.memory_space<vmem>>, vector<128x128xf32>
    %cst_8 = arith.constant dense<0.000000e+00> : vector<8x128xf32>
    %11 = tpu.matmul %8, %10, %cst_8 {dimension_numbers = #tpu.dot_dimension_numbers<[1], [0], [0], [1], [0, 0, 1, 1], [], []>} : vector<8x128xf32>, vector<128x128xf32>, vector<8x128xf32> -> vector<8x128xf32>
    %12 = arith.addf %9, %11 : vector<8x128xf32>
    %c0_9 = arith.constant 0 : index
    %c0_10 = arith.constant 0 : index
    %13 = vector.load %arg5[%c0_9, %c0_10] : memref<1x128xf32, #tpu.memory_space<vmem>>, vector<1x128xf32>
    %14 = vector.broadcast %13 : vector<1x128xf32> to vector<8x128xf32>
    %15 = arith.addf %12, %14 : vector<8x128xf32>
    %cst_11 = arith.constant 0.000000e+00 : f32
    %16 = vector.broadcast %cst_11 : f32 to vector<8x128xf32>
    %17 = arith.maximumf %15, %16 : vector<8x128xf32>
    %18 = vector.extract_strided_slice %2 {offsets = [0, 256], sizes = [8, 128], strides = [1, 1]} : vector<8x512xf32> to vector<8x128xf32>
    %c0_12 = arith.constant 0 : index
    %c0_13 = arith.constant 0 : index
    %19 = vector.load %arg6[%c0_12, %c0_13] : memref<128x128xf32, #tpu.memory_space<vmem>>, vector<128x128xf32>
    %cst_14 = arith.constant dense<0.000000e+00> : vector<8x128xf32>
    %20 = tpu.matmul %17, %19, %cst_14 {dimension_numbers = #tpu.dot_dimension_numbers<[1], [0], [0], [1], [0, 0, 1, 1], [], []>} : vector<8x128xf32>, vector<128x128xf32>, vector<8x128xf32> -> vector<8x128xf32>
    %21 = arith.addf %18, %20 : vector<8x128xf32>
    %c0_15 = arith.constant 0 : index
    %c0_16 = arith.constant 0 : index
    %22 = vector.load %arg7[%c0_15, %c0_16] : memref<1x128xf32, #tpu.memory_space<vmem>>, vector<1x128xf32>
    %23 = vector.broadcast %22 : vector<1x128xf32> to vector<8x128xf32>
    %24 = arith.addf %21, %23 : vector<8x128xf32>
    %cst_17 = arith.constant 0.000000e+00 : f32
    %25 = vector.broadcast %cst_17 : f32 to vector<8x128xf32>
    %26 = arith.maximumf %24, %25 : vector<8x128xf32>
    %27 = vector.extract_strided_slice %2 {offsets = [0, 384], sizes = [8, 128], strides = [1, 1]} : vector<8x512xf32> to vector<8x128xf32>
    %c0_18 = arith.constant 0 : index
    %c0_19 = arith.constant 0 : index
    %28 = vector.load %arg8[%c0_18, %c0_19] : memref<128x128xf32, #tpu.memory_space<vmem>>, vector<128x128xf32>
    %cst_20 = arith.constant dense<0.000000e+00> : vector<8x128xf32>
    %29 = tpu.matmul %26, %28, %cst_20 {dimension_numbers = #tpu.dot_dimension_numbers<[1], [0], [0], [1], [0, 0, 1, 1], [], []>} : vector<8x128xf32>, vector<128x128xf32>, vector<8x128xf32> -> vector<8x128xf32>
    %30 = arith.addf %27, %29 : vector<8x128xf32>
    %c0_21 = arith.constant 0 : index
    %c0_22 = arith.constant 0 : index
    %31 = vector.load %arg9[%c0_21, %c0_22] : memref<1x128xf32, #tpu.memory_space<vmem>>, vector<1x128xf32>
    %32 = vector.broadcast %31 : vector<1x128xf32> to vector<8x128xf32>
    %33 = arith.addf %30, %32 : vector<8x128xf32>
    %cst_23 = arith.constant 0.000000e+00 : f32
    %34 = vector.broadcast %cst_23 : f32 to vector<8x128xf32>
    %35 = arith.maximumf %33, %34 : vector<8x128xf32>
    %36 = tpu.concatenate %8, %17, %26, %35 in 1 : vector<8x128xf32>, vector<8x128xf32>, vector<8x128xf32>, vector<8x128xf32> -> vector<8x512xf32>
    %c0_24 = arith.constant 0 : index
    %c0_25 = arith.constant 0 : index
    %37 = vector.load %arg10[%c0_24, %c0_25] : memref<512x128xf32, #tpu.memory_space<vmem>>, vector<512x128xf32>
    %cst_26 = arith.constant dense<0.000000e+00> : vector<8x128xf32>
    %38 = tpu.matmul %36, %37, %cst_26 {dimension_numbers = #tpu.dot_dimension_numbers<[1], [0], [0], [1], [0, 0, 1, 1], [], []>} : vector<8x512xf32>, vector<512x128xf32>, vector<8x128xf32> -> vector<8x128xf32>
    %c0_27 = arith.constant 0 : index
    %c0_28 = arith.constant 0 : index
    %39 = vector.load %arg11[%c0_27, %c0_28] : memref<1x128xf32, #tpu.memory_space<vmem>>, vector<1x128xf32>
    %40 = vector.broadcast %39 : vector<1x128xf32> to vector<8x128xf32>
    %41 = arith.addf %38, %40 : vector<8x128xf32>
    %c0_29 = arith.constant 0 : index
    %c0_30 = arith.constant 0 : index
    %42 = vector.load %arg12[%c0_29, %c0_30] : memref<8x128xf32, #tpu.memory_space<vmem>>, vector<8x128xf32>
    tpu.vector_store %arg12[%c0_29, %c0_30], %41 {strides = array<i32>} : memref<8x128xf32, #tpu.memory_space<vmem>>, vector<8x128xf32>,
    return
  }
  func.func @transform_0(%arg0: i32) -> (i32, i32) {
    %c0_i32 = arith.constant 0 : i32
    %c0_i32_0 = arith.constant 0 : i32
    return %arg0, %c0_i32 : i32, i32
  }
  func.func @transform_1(%arg0: i32) -> (i32, i32) {
    %c0_i32 = arith.constant 0 : i32
    %c0_i32_0 = arith.constant 0 : i32
    %c0_i32_1 = arith.constant 0 : i32
    return %c0_i32, %c0_i32_0 : i32, i32
  }
  func.func @transform_2(%arg0: i32) -> (i32, i32) {
    %c0_i32 = arith.constant 0 : i32
    %c0_i32_0 = arith.constant 0 : i32
    %c0_i32_1 = arith.constant 0 : i32
    return %c0_i32, %c0_i32_0 : i32, i32
  }
  func.func @transform_3(%arg0: i32) -> (i32, i32) {
    %c0_i32 = arith.constant 0 : i32
    %c0_i32_0 = arith.constant 0 : i32
    %c0_i32_1 = arith.constant 0 : i32
    return %c0_i32, %c0_i32_0 : i32, i32
  }
  func.func @transform_4(%arg0: i32) -> (i32, i32) {
    %c0_i32 = arith.constant 0 : i32
    %c0_i32_0 = arith.constant 0 : i32
    %c0_i32_1 = arith.constant 0 : i32
    return %c0_i32, %c0_i32_0 : i32, i32
  }
  func.func @transform_5(%arg0: i32) -> (i32, i32) {
    %c0_i32 = arith.constant 0 : i32
    %c0_i32_0 = arith.constant 0 : i32
    %c0_i32_1 = arith.constant 0 : i32
    return %c0_i32, %c0_i32_0 : i32, i32
  }
  func.func @transform_6(%arg0: i32) -> (i32, i32) {
    %c0_i32 = arith.constant 0 : i32
    %c0_i32_0 = arith.constant 0 : i32
    %c0_i32_1 = arith.constant 0 : i32
    return %c0_i32, %c0_i32_0 : i32, i32
  }
  func.func @transform_7(%arg0: i32) -> (i32, i32) {
    %c0_i32 = arith.constant 0 : i32
    %c0_i32_0 = arith.constant 0 : i32
    %c0_i32_1 = arith.constant 0 : i32
    return %c0_i32, %c0_i32_0 : i32, i32
  }
  func.func @transform_8(%arg0: i32) -> (i32, i32) {
    %c0_i32 = arith.constant 0 : i32
    %c0_i32_0 = arith.constant 0 : i32
    %c0_i32_1 = arith.constant 0 : i32
    return %c0_i32, %c0_i32_0 : i32, i32
  }
  func.func @transform_9(%arg0: i32) -> (i32, i32) {
    %c0_i32 = arith.constant 0 : i32
    %c0_i32_0 = arith.constant 0 : i32
    %c0_i32_1 = arith.constant 0 : i32
    return %c0_i32, %c0_i32_0 : i32, i32
  }
  func.func @transform_10(%arg0: i32) -> (i32, i32) {
    %c0_i32 = arith.constant 0 : i32
    %c0_i32_0 = arith.constant 0 : i32
    %c0_i32_1 = arith.constant 0 : i32
    return %c0_i32, %c0_i32_0 : i32, i32
  }
  func.func @transform_11(%arg0: i32) -> (i32, i32) {
    %c0_i32 = arith.constant 0 : i32
    %c0_i32_0 = arith.constant 0 : i32
    return %arg0, %c0_i32 : i32, i32
  }
}

</mosaic_0001>

<llo_original>
// kernel: tpu_custom_call.1
$region0: #{tpu_custom_call.1}
  #allocation0 [shape = 'u32[]', space=smem, size = 0x4, offset = 0x4, fixed_abs, tag = 'smem constant byte address 0x4 - core index']
  #allocation1 [shape = 'u32[144,128]{1,0:T(1,128)}', space=vmem, size = 0x12000, scoped, tag = 'internal scratch']
  %s0 = inlined_call_operand.hbm [shape: f32[24,32], index: 0, kind: input, shape index: {}]
  %s1 = inlined_call_operand.hbm [shape: f32[32,512], index: 1, kind: input, shape index: {}]
  %s2 = inlined_call_operand.vmem [shape: f32[1,128], index: 2, kind: input, shape index: {}]
  %s3 = inlined_call_operand.hbm [shape: f32[128,128], index: 3, kind: input, shape index: {}]
  %s4 = inlined_call_operand.vmem [shape: f32[1,128], index: 4, kind: input, shape index: {}]
  %s5 = inlined_call_operand.hbm [shape: f32[128,128], index: 5, kind: input, shape index: {}]
  %s6 = inlined_call_operand.vmem [shape: f32[1,128], index: 6, kind: input, shape index: {}]
  %s7 = inlined_call_operand.hbm [shape: f32[128,128], index: 7, kind: input, shape index: {}]
  %s8 = inlined_call_operand.vmem [shape: f32[1,128], index: 8, kind: input, shape index: {}]
  %s9 = inlined_call_operand.hbm [shape: f32[512,128], index: 9, kind: input, shape index: {}]
  %s10 = inlined_call_operand.vmem [shape: f32[1,128], index: 10, kind: input, shape index: {}]
  %s11 = inlined_call_operand.hbm [shape: f32[24,128], index: 11, kind: output, shape index: {}]
  %s12 = sld [smem:[#allocation0]]
  $region101: #{tpu_custom_call.1} parent=0
    _
  %s14 = ssub.s32 1, %s12
  %s15 = scalar_select 0, %s14, %s12
  $region1: #{tpu_custom_call.1} parent=0
    #allocation2 [shape = 'u8[8192]{0}', space=vmem, size = 0x2000, scoped, tag = 'input window, operand 0']
    #allocation3 [shape = 's32[2]{0}', space=sflag, size = 0x8, scoped, tag = 'scoped memory for tpu_custom_call.1']
    #allocation4 [shape = 's32[2]{0}', space=sflag, size = 0x8, scoped, tag = 'scoped memory for tpu_custom_call.1']
    #allocation5 [shape = 'u8[65536]{0}', space=vmem, size = 0x10000, scoped, tag = 'input window, operand 1, single buffered']
    #allocation6 [shape = 's32[1]{0}', space=sflag, size = 0x4, scoped, tag = 'scoped memory for tpu_custom_call.1']
    #allocation7 [shape = 'u8[65536]{0}', space=vmem, size = 0x10000, scoped, tag = 'input window, operand 3, single buffered']
    #allocation8 [shape = 'u8[65536]{0}', space=vmem, size = 0x10000, scoped, tag = 'input window, operand 5, single buffered']
    #allocation9 [shape = 's32[1]{0}', space=sflag, size = 0x4, scoped, tag = 'scoped memory for tpu_custom_call.1']
    #allocation10 [shape = 'u8[65536]{0}', space=vmem, size = 0x10000, scoped, tag = 'input window, operand 7, single buffered']
    #allocation11 [shape = 'u8[262144]{0}', space=vmem, size = 0x40000, scoped, tag = 'input window, operand 9, single buffered']
    #allocation12 [shape = 's32[1]{0}', space=sflag, size = 0x4, scoped, tag = 'scoped memory for tpu_custom_call.1']
    #allocation13 [shape = 'u8[8192]{0}', space=vmem, size = 0x2000, scoped, tag = 'output window, operand 0']
    %16 = vsyncpa [#allocation3], 0
    %s17 = scalar_lea.sflag [#allocation3], 1
    %18 = vsyncpa %s17, 0
    %19 = vsyncpa [#allocation6], 0
    %20 = vsyncpa [#allocation9], 0
    %21 = vsyncpa [#allocation12], 0
    %22 = vsyncpa [#allocation4], 0
    %s23 = scalar_lea.sflag [#allocation4], 1
    %24 = vsyncpa %s23, 0
    loop: start=0, step=1, limit=5
    $region2: #{tpu_custom_call.1} parent=1 // loop_pre_header
      _
    $region3: #{tpu_custom_call.1} parent=1 // loop_header
      %s26 = sphi 0, %s30
      %p27 = scmp.ge.s32.totalorder %s26, 5
      %s36 = sphi 0, %s38
      %s39 = sphi 0, %s36
      %s40 = sphi 0, %s39
      %s56 = sphi 0, %s40
      %s60 = sphi 0, %s60
      %s62 = sphi 0, %s60
      %s63 = sphi 0, %s62
      %s77 = sphi 0, %s63
      %s81 = sphi 0, %s81
      %s83 = sphi 0, %s81
      %s84 = sphi 0, %s83
      %s98 = sphi 0, %s84
      %s102 = sphi 0, %s102
      %s104 = sphi 0, %s102
      %s105 = sphi 0, %s104
      %s119 = sphi 0, %s105
      %s123 = sphi 0, %s123
      %s125 = sphi 0, %s123
      %s126 = sphi 0, %s125
      %s140 = sphi 0, %s126
      %s144 = sphi 0, %s144
      %s146 = sphi 0, %s144
      %s147 = sphi 0, %s146
      %s161 = sphi 0, %s147
      %s165 = sphi 0, %s165
      %s167 = sphi 0, %s165
      %s168 = sphi 0, %s167
      %s182 = sphi 0, %s168
      %s186 = sphi 0, %s186
      %s188 = sphi 0, %s186
      %s189 = sphi 0, %s188
      %s203 = sphi 0, %s189
      %s207 = sphi 0, %s207
      %s209 = sphi 0, %s207
      %s210 = sphi 0, %s209
      %s224 = sphi 0, %s210
      %s228 = sphi 0, %s228
      %s230 = sphi 0, %s228
      %s231 = sphi 0, %s230
      %s245 = sphi 0, %s231
      %s249 = sphi 0, %s249
      %s251 = sphi 0, %s249
      %s252 = sphi 0, %s251
      %s266 = sphi 0, %s252
      %s272 = sphi 0, %s274
      %s275 = sphi 0, %s272
      %s276 = sphi 0, %s275
      %s292 = sphi 0, %s276
    $region4: #{tpu_custom_call.1} parent=1 // loop_header_branch
      %29 = sbr.rel (%p27) target = $region8
    $region5: #{tpu_custom_call.1} parent=1 // loop_body
      %s31 = ssub.s32 %s26, 1
      %s32 = ssub.s32 %s26, 2
      %s33 = sadd.s32 %s26, 1
      %s34 = ssub.s32 %s26, %s33
      %p35 = scmp.eq.s32.totalorder %s34, 0
      %s37 = sadd.s32 %s36, 1
      %s38 = scalar_select %p35, %s36, %s37
      %p41 = pneg %p35
      %p42 = scmp.eq.s32.totalorder %s26, 2
      %p43 = por %p41, %p42
      %p44 = scmp.ne.s32.totalorder %s36, %s39
      %p45 = scmp.eq.s32.totalorder %s26, 0
      %p46 = por %p44, %p45
      %p47 = scmp.ne.s32.totalorder %s36, %s39
      %p48 = scmp.eq.s32.totalorder %s31, 2
      %p49 = por %p47, %p48
      %p50 = scmp.ne.s32.totalorder %s39, %s40
      %p51 = scmp.eq.s32.totalorder %s31, 0
      %p52 = por %p50, %p51
      %p53 = scmp.ne.s32.totalorder %s39, %s40
      %p54 = scmp.eq.s32.totalorder %s32, 2
      %p55 = por %p53, %p54
      %p57 = scmp.ne.s32.totalorder %s40, %s56
      %p58 = scmp.eq.s32.totalorder %s32, 0
      %p59 = por %p57, %p58
      %s61 = sadd.s32 %s60, 1
      %p64 = scmp.eq.s32.totalorder %s26, 2
      %p65 = scmp.ne.s32.totalorder %s60, %s62
      %p66 = scmp.eq.s32.totalorder %s26, 0
      %p67 = por %p65, %p66
      %p68 = scmp.ne.s32.totalorder %s60, %s62
      %p69 = scmp.eq.s32.totalorder %s31, 2
      %p70 = por %p68, %p69
      %p71 = scmp.ne.s32.totalorder %s62, %s63
      %p72 = scmp.eq.s32.totalorder %s31, 0
      %p73 = por %p71, %p72
      %p74 = scmp.ne.s32.totalorder %s62, %s63
      %p75 = scmp.eq.s32.totalorder %s32, 2
      %p76 = por %p74, %p75
      %p78 = scmp.ne.s32.totalorder %s63, %s77
      %p79 = scmp.eq.s32.totalorder %s32, 0
      %p80 = por %p78, %p79
      %s82 = sadd.s32 %s81, 1
      %p85 = scmp.eq.s32.totalorder %s26, 2
      %p86 = scmp.ne.s32.totalorder %s81, %s83
      %p87 = scmp.eq.s32.totalorder %s26, 0
      %p88 = por %p86, %p87
      %p89 = scmp.ne.s32.totalorder %s81, %s83
      %p90 = scmp.eq.s32.totalorder %s31, 2
      %p91 = por %p89, %p90
      %p92 = scmp.ne.s32.totalorder %s83, %s84
      %p93 = scmp.eq.s32.totalorder %s31, 0
      %p94 = por %p92, %p93
      %p95 = scmp.ne.s32.totalorder %s83, %s84
      %p96 = scmp.eq.s32.totalorder %s32, 2
      %p97 = por %p95, %p96
      %p99 = scmp.ne.s32.totalorder %s84, %s98
      %p100 = scmp.eq.s32.totalorder %s32, 0
      %p101 = por %p99, %p100
      %s103 = sadd.s32 %s102, 1
      %p106 = scmp.eq.s32.totalorder %s26, 2
      %p107 = scmp.ne.s32.totalorder %s102, %s104
      %p108 = scmp.eq.s32.totalorder %s26, 0
      %p109 = por %p107, %p108
      %p110 = scmp.ne.s32.totalorder %s102, %s104
      %p111 = scmp.eq.s32.totalorder %s31, 2
      %p112 = por %p110, %p111
      %p113 = scmp.ne.s32.totalorder %s104, %s105
      %p114 = scmp.eq.s32.totalorder %s31, 0
      %p115 = por %p113, %p114
      %p116 = scmp.ne.s32.totalorder %s104, %s105
      %p117 = scmp.eq.s32.totalorder %s32, 2
      %p118 = por %p116, %p117
      %p120 = scmp.ne.s32.totalorder %s105, %s119
      %p121 = scmp.eq.s32.totalorder %s32, 0
      %p122 = por %p120, %p121
      %s124 = sadd.s32 %s123, 1
      %p127 = scmp.eq.s32.totalorder %s26, 2
      %p128 = scmp.ne.s32.totalorder %s123, %s125
      %p129 = scmp.eq.s32.totalorder %s26, 0
      %p130 = por %p128, %p129
      %p131 = scmp.ne.s32.totalorder %s123, %s125
      %p132 = scmp.eq.s32.totalorder %s31, 2
      %p133 = por %p131, %p132
      %p134 = scmp.ne.s32.totalorder %s125, %s126
      %p135 = scmp.eq.s32.totalorder %s31, 0
      %p136 = por %p134, %p135
      %p137 = scmp.ne.s32.totalorder %s125, %s126
      %p138 = scmp.eq.s32.totalorder %s32, 2
      %p139 = por %p137, %p138
      %p141 = scmp.ne.s32.totalorder %s126, %s140
      %p142 = scmp.eq.s32.totalorder %s32, 0
      %p143 = por %p141, %p142
      %s145 = sadd.s32 %s144, 1
      %p148 = scmp.eq.s32.totalorder %s26, 2
      %p149 = scmp.ne.s32.totalorder %s144, %s146
      %p150 = scmp.eq.s32.totalorder %s26, 0
      %p151 = por %p149, %p150
      %p152 = scmp.ne.s32.totalorder %s144, %s146
      %p153 = scmp.eq.s32.totalorder %s31, 2
      %p154 = por %p152, %p153
      %p155 = scmp.ne.s32.totalorder %s146, %s147
      %p156 = scmp.eq.s32.totalorder %s31, 0
      %p157 = por %p155, %p156
      %p158 = scmp.ne.s32.totalorder %s146, %s147
      %p159 = scmp.eq.s32.totalorder %s32, 2
      %p160 = por %p158, %p159
      %p162 = scmp.ne.s32.totalorder %s147, %s161
      %p163 = scmp.eq.s32.totalorder %s32, 0
      %p164 = por %p162, %p163
      %s166 = sadd.s32 %s165, 1
      %p169 = scmp.eq.s32.totalorder %s26, 2
      %p170 = scmp.ne.s32.totalorder %s165, %s167
      %p171 = scmp.eq.s32.totalorder %s26, 0
      %p172 = por %p170, %p171
      %p173 = scmp.ne.s32.totalorder %s165, %s167
      %p174 = scmp.eq.s32.totalorder %s31, 2
      %p175 = por %p173, %p174
      %p176 = scmp.ne.s32.totalorder %s167, %s168
      %p177 = scmp.eq.s32.totalorder %s31, 0
      %p178 = por %p176, %p177
      %p179 = scmp.ne.s32.totalorder %s167, %s168
      %p180 = scmp.eq.s32.totalorder %s32, 2
      %p181 = por %p179, %p180
      %p183 = scmp.ne.s32.totalorder %s168, %s182
      %p184 = scmp.eq.s32.totalorder %s32, 0
      %p185 = por %p183, %p184
      %s187 = sadd.s32 %s186, 1
      %p190 = scmp.eq.s32.totalorder %s26, 2
      %p191 = scmp.ne.s32.totalorder %s186, %s188
      %p192 = scmp.eq.s32.totalorder %s26, 0
      %p193 = por %p191, %p192
      %p194 = scmp.ne.s32.totalorder %s186, %s188
      %p195 = scmp.eq.s32.totalorder %s31, 2
      %p196 = por %p194, %p195
      %p197 = scmp.ne.s32.totalorder %s188, %s189
      %p198 = scmp.eq.s32.totalorder %s31, 0
      %p199 = por %p197, %p198
      %p200 = scmp.ne.s32.totalorder %s188, %s189
      %p201 = scmp.eq.s32.totalorder %s32, 2
      %p202 = por %p200, %p201
      %p204 = scmp.ne.s32.totalorder %s189, %s203
      %p205 = scmp.eq.s32.totalorder %s32, 0
      %p206 = por %p204, %p205
      %s208 = sadd.s32 %s207, 1
      %p211 = scmp.eq.s32.totalorder %s26, 2
      %p212 = scmp.ne.s32.totalorder %s207, %s209
      %p213 = scmp.eq.s32.totalorder %s26, 0
      %p214 = por %p212, %p213
      %p215 = scmp.ne.s32.totalorder %s207, %s209
      %p216 = scmp.eq.s32.totalorder %s31, 2
      %p217 = por %p215, %p216
      %p218 = scmp.ne.s32.totalorder %s209, %s210
      %p219 = scmp.eq.s32.totalorder %s31, 0
      %p220 = por %p218, %p219
      %p221 = scmp.ne.s32.totalorder %s209, %s210
      %p222 = scmp.eq.s32.totalorder %s32, 2
      %p223 = por %p221, %p222
      %p225 = scmp.ne.s32.totalorder %s210, %s224
      %p226 = scmp.eq.s32.totalorder %s32, 0
      %p227 = por %p225, %p226
      %s229 = sadd.s32 %s228, 1
      %p232 = scmp.eq.s32.totalorder %s26, 2
      %p233 = scmp.ne.s32.totalorder %s228, %s230
      %p234 = scmp.eq.s32.totalorder %s26, 0
      %p235 = por %p233, %p234
      %p236 = scmp.ne.s32.totalorder %s228, %s230
      %p237 = scmp.eq.s32.totalorder %s31, 2
      %p238 = por %p236, %p237
      %p239 = scmp.ne.s32.totalorder %s230, %s231
      %p240 = scmp.eq.s32.totalorder %s31, 0
      %p241 = por %p239, %p240
      %p242 = scmp.ne.s32.totalorder %s230, %s231
      %p243 = scmp.eq.s32.totalorder %s32, 2
      %p244 = por %p242, %p243
      %p246 = scmp.ne.s32.totalorder %s231, %s245
      %p247 = scmp.eq.s32.totalorder %s32, 0
      %p248 = por %p246, %p247
      %s250 = sadd.s32 %s249, 1
      %p253 = scmp.eq.s32.totalorder %s26, 2
      %p254 = scmp.ne.s32.totalorder %s249, %s251
      %p255 = scmp.eq.s32.totalorder %s26, 0
      %p256 = por %p254, %p255
      %p257 = scmp.ne.s32.totalorder %s249, %s251
      %p258 = scmp.eq.s32.totalorder %s31, 2
      %p259 = por %p257, %p258
      %p260 = scmp.ne.s32.totalorder %s251, %s252
      %p261 = scmp.eq.s32.totalorder %s31, 0
      %p262 = por %p260, %p261
      %p263 = scmp.ne.s32.totalorder %s251, %s252
      %p264 = scmp.eq.s32.totalorder %s32, 2
      %p265 = por %p263, %p264
      %p267 = scmp.ne.s32.totalorder %s252, %s266
      %p268 = scmp.eq.s32.totalorder %s32, 0
      %p269 = por %p267, %p268
      %s270 = ssub.s32 %s26, %s33
      %p271 = scmp.eq.s32.totalorder %s270, 0
      %s273 = sadd.s32 %s272, 1
      %s274 = scalar_select %p271, %s272, %s273
      %p277 = pneg %p271
      %p278 = scmp.eq.s32.totalorder %s26, 2
      %p279 = por %p277, %p278
      %p280 = scmp.ne.s32.totalorder %s272, %s275
      %p281 = scmp.eq.s32.totalorder %s26, 0
      %p282 = por %p280, %p281
      %p283 = scmp.ne.s32.totalorder %s272, %s275
      %p284 = scmp.eq.s32.totalorder %s31, 2
      %p285 = por %p283, %p284
      %p286 = scmp.ne.s32.totalorder %s275, %s276
      %p287 = scmp.eq.s32.totalorder %s31, 0
      %p288 = por %p286, %p287
      %p289 = scmp.ne.s32.totalorder %s275, %s276
      %p290 = scmp.eq.s32.totalorder %s32, 2
      %p291 = por %p289, %p290
      %p293 = scmp.ne.s32.totalorder %s276, %s292
      %p294 = scmp.eq.s32.totalorder %s32, 0
      %p295 = por %p293, %p294
      %p296 = scmp.le.s32.totalorder 1, %s26
      %p297 = scmp.lt.s32.totalorder %s26, 4
      %p298 = pnand %p296, %p297
      %p299 = pneg %p298
      // Predicated region
      $region9: #{tpu_custom_call.1} parent=5 // pred_check
        _
      $region10: #{tpu_custom_call.1} parent=5 // pred_check_branch
        %301 = sbr.rel (%p298) target = $region12
      $region11: #{tpu_custom_call.1} parent=5 // pred_region
        %s302 = ssub.s32 %s26, 1
        // Predicated region
        $region13: #{tpu_custom_call.1} parent=11 // pred_check
          %p303 = pneg %p73
        $region14: #{tpu_custom_call.1} parent=11 // pred_check_branch
          %305 = sbr.rel (%p303) target = $region16
        $region15: #{tpu_custom_call.1} parent=11 // pred_region
          %s307 = ssub.s32 2048, 2048
          %308 = vsyncadd [#allocation6], %s307
          %s309 = sshll.u32 [#allocation5], 4
          %s310 = int_to_ptr.vmem [resolvable:$true] %s309
          %315 = dma.hbm_to_vmem [thread:$0]  %s1, 2048, %s310, [#allocation6], 512, 512, 32
        $region16: #{tpu_custom_call.1} parent=11 // pred_fallthru
          _
        // Predicated region
        $region17: #{tpu_custom_call.1} parent=11 // pred_check
          %p316 = pneg %p94
        $region18: #{tpu_custom_call.1} parent=11 // pred_check_branch
          %318 = sbr.rel (%p316) target = $region20
        $region19: #{tpu_custom_call.1} parent=11 // pred_region
          _
        $region20: #{tpu_custom_call.1} parent=11 // pred_fallthru
          _
        // Predicated region
        $region21: #{tpu_custom_call.1} parent=11 // pred_check
          %p319 = pneg %p115
        $region22: #{tpu_custom_call.1} parent=11 // pred_check_branch
          %321 = sbr.rel (%p319) target = $region24
        $region23: #{tpu_custom_call.1} parent=11 // pred_region
          %s323 = ssub.s32 2048, 2048
          %324 = vsyncadd [#allocation6], %s323
          %s325 = sshll.u32 [#allocation7], 4
          %s326 = int_to_ptr.vmem [resolvable:$true] %s325
          %331 = dma.hbm_to_vmem [thread:$0]  %s3, 2048, %s326, [#allocation6], 128, 128, 8
        $region24: #{tpu_custom_call.1} parent=11 // pred_fallthru
          _
        // Predicated region
        $region25: #{tpu_custom_call.1} parent=11 // pred_check
          %p332 = pneg %p136
        $region26: #{tpu_custom_call.1} parent=11 // pred_check_branch
          %334 = sbr.rel (%p332) target = $region28
        $region27: #{tpu_custom_call.1} parent=11 // pred_region
          _
        $region28: #{tpu_custom_call.1} parent=11 // pred_fallthru
          _
        // Predicated region
        $region29: #{tpu_custom_call.1} parent=11 // pred_check
          %p335 = pneg %p157
        $region30: #{tpu_custom_call.1} parent=11 // pred_check_branch
          %337 = sbr.rel (%p335) target = $region32
        $region31: #{tpu_custom_call.1} parent=11 // pred_region
          %s339 = ssub.s32 2048, 2048
          %340 = vsyncadd [#allocation9], %s339
          %s341 = sshll.u32 [#allocation8], 4
          %s342 = int_to_ptr.vmem [resolvable:$true] %s341
          %347 = dma.hbm_to_vmem [thread:$0]  %s5, 2048, %s342, [#allocation9], 128, 128, 8
        $region32: #{tpu_custom_call.1} parent=11 // pred_fallthru
          _
        // Predicated region
        $region33: #{tpu_custom_call.1} parent=11 // pred_check
          %p348 = pneg %p178
        $region34: #{tpu_custom_call.1} parent=11 // pred_check_branch
          %350 = sbr.rel (%p348) target = $region36
        $region35: #{tpu_custom_call.1} parent=11 // pred_region
          _
        $region36: #{tpu_custom_call.1} parent=11 // pred_fallthru
          _
        // Predicated region
        $region37: #{tpu_custom_call.1} parent=11 // pred_check
          %p351 = pneg %p199
        $region38: #{tpu_custom_call.1} parent=11 // pred_check_branch
          %353 = sbr.rel (%p351) target = $region40
        $region39: #{tpu_custom_call.1} parent=11 // pred_region
          %s355 = ssub.s32 2048, 2048
          %356 = vsyncadd [#allocation9], %s355
          %s357 = sshll.u32 [#allocation10], 4
          %s358 = int_to_ptr.vmem [resolvable:$true] %s357
          %363 = dma.hbm_to_vmem [thread:$0]  %s7, 2048, %s358, [#allocation9], 128, 128, 8
        $region40: #{tpu_custom_call.1} parent=11 // pred_fallthru
          _
        // Predicated region
        $region41: #{tpu_custom_call.1} parent=11 // pred_check
          %p364 = pneg %p220
        $region42: #{tpu_custom_call.1} parent=11 // pred_check_branch
          %366 = sbr.rel (%p364) target = $region44
        $region43: #{tpu_custom_call.1} parent=11 // pred_region
          _
        $region44: #{tpu_custom_call.1} parent=11 // pred_fallthru
          _
        // Predicated region
        $region45: #{tpu_custom_call.1} parent=11 // pred_check
          %p367 = pneg %p241
        $region46: #{tpu_custom_call.1} parent=11 // pred_check_branch
          %369 = sbr.rel (%p367) target = $region48
        $region47: #{tpu_custom_call.1} parent=11 // pred_region
          %s371 = ssub.s32 8192, 8192
          %372 = vsyncadd [#allocation12], %s371
          %s373 = sshll.u32 [#allocation11], 4
          %s374 = int_to_ptr.vmem [resolvable:$true] %s373
          %379 = dma.hbm_to_vmem [thread:$0]  %s9, 8192, %s374, [#allocation12], 128, 128, 8
        $region48: #{tpu_custom_call.1} parent=11 // pred_fallthru
          _
        // Predicated region
        $region49: #{tpu_custom_call.1} parent=11 // pred_check
          %p380 = pneg %p262
        $region50: #{tpu_custom_call.1} parent=11 // pred_check_branch
          %382 = sbr.rel (%p380) target = $region52
        $region51: #{tpu_custom_call.1} parent=11 // pred_region
          _
        $region52: #{tpu_custom_call.1} parent=11 // pred_fallthru
          _
      $region12: #{tpu_custom_call.1} parent=5 // pred_fallthru
        _
      %p383 = scmp.lt.s32.totalorder %s26, 3
      // Predicated region
      $region53: #{tpu_custom_call.1} parent=5 // pred_check
        %p384 = pneg %p383
      $region54: #{tpu_custom_call.1} parent=5 // pred_check_branch
        %386 = sbr.rel (%p384) target = $region56
      $region55: #{tpu_custom_call.1} parent=5 // pred_region
        // Predicated region
        $region57: #{tpu_custom_call.1} parent=55 // pred_check
          %p387 = pneg %p46
        $region58: #{tpu_custom_call.1} parent=55 // pred_check_branch
          %389 = sbr.rel (%p387) target = $region60
        $region59: #{tpu_custom_call.1} parent=55 // pred_region
          %s390 = sand.u32 %s36, 1
          %s391 = scalar_lea.sflag [#allocation3], %s390
          %s392 = sand.u32 %s36, 1
          %s393 = smul.addr %s392, 8
          %s394 = scalar_lea.vmem [#allocation2], %s393
          %s396 = ssub.s32 128, 128
          %397 = vsyncadd %s391, %s396
          %s398 = smul.addr %s26, 128
          %s399 = scalar_lea.hbm %s0, %s398
          %s401 = sshll.u32 %s394, 4
          %s402 = int_to_ptr.vmem [resolvable:$true] %s401
          %404 = dma.hbm_to_vmem [thread:$0]  %s399, 128, %s402, %s391
        $region60: #{tpu_custom_call.1} parent=55 // pred_fallthru
          _
      $region56: #{tpu_custom_call.1} parent=5 // pred_fallthru
        _
      %p405 = scmp.le.s32.totalorder 1, %s26
      %p406 = scmp.lt.s32.totalorder %s26, 4
      %p407 = pnand %p405, %p406
      %p408 = pneg %p407
      // Predicated region
      $region61: #{tpu_custom_call.1} parent=5 // pred_check
        _
      $region62: #{tpu_custom_call.1} parent=5 // pred_check_branch
        %410 = sbr.rel (%p407) target = $region64
      $region63: #{tpu_custom_call.1} parent=5 // pred_region
        %s411 = ssub.s32 %s26, 1
        %s412 = sand.u32 %s39, 1
        %s413 = scalar_lea.sflag [#allocation3], %s412
        %s414 = sand.u32 %s39, 1
        %s415 = smul.addr %s414, 8
        %s416 = scalar_lea.vmem [#allocation2], %s415
        // Predicated region
        $region65: #{tpu_custom_call.1} parent=63 // pred_check
          %p417 = pneg %p52
        $region66: #{tpu_custom_call.1} parent=63 // pred_check_branch
          %419 = sbr.rel (%p417) target = $region68
        $region67: #{tpu_custom_call.1} parent=63 // pred_region
          %420 = dma.done %s413, 128
        $region68: #{tpu_custom_call.1} parent=63 // pred_fallthru
          _
        // Predicated region
        $region69: #{tpu_custom_call.1} parent=63 // pred_check
          %p421 = pneg %p73
        $region70: #{tpu_custom_call.1} parent=63 // pred_check_branch
          %423 = sbr.rel (%p421) target = $region72
        $region71: #{tpu_custom_call.1} parent=63 // pred_region
          %424 = dma.done [#allocation6], 2048
        $region72: #{tpu_custom_call.1} parent=63 // pred_fallthru
          _
        // Predicated region
        $region73: #{tpu_custom_call.1} parent=63 // pred_check
          %p425 = pneg %p115
        $region74: #{tpu_custom_call.1} parent=63 // pred_check_branch
          %427 = sbr.rel (%p425) target = $region76
        $region75: #{tpu_custom_call.1} parent=63 // pred_region
          %428 = dma.done [#allocation6], 2048
        $region76: #{tpu_custom_call.1} parent=63 // pred_fallthru
          _
        // Predicated region
        $region77: #{tpu_custom_call.1} parent=63 // pred_check
          %p429 = pneg %p157
        $region78: #{tpu_custom_call.1} parent=63 // pred_check_branch
          %431 = sbr.rel (%p429) target = $region80
        $region79: #{tpu_custom_call.1} parent=63 // pred_region
          %432 = dma.done [#allocation9], 2048
        $region80: #{tpu_custom_call.1} parent=63 // pred_fallthru
          _
        // Predicated region
        $region81: #{tpu_custom_call.1} parent=63 // pred_check
          %p433 = pneg %p199
        $region82: #{tpu_custom_call.1} parent=63 // pred_check_branch
          %435 = sbr.rel (%p433) target = $region84
        $region83: #{tpu_custom_call.1} parent=63 // pred_region
          %436 = dma.done [#allocation9], 2048
        $region84: #{tpu_custom_call.1} parent=63 // pred_fallthru
          _
        // Predicated region
        $region85: #{tpu_custom_call.1} parent=63 // pred_check
          %p437 = pneg %p241
        $region86: #{tpu_custom_call.1} parent=63 // pred_check_branch
          %439 = sbr.rel (%p437) target = $region88
        $region87: #{tpu_custom_call.1} parent=63 // pred_region
          %440 = dma.done [#allocation12], 8192
        $region88: #{tpu_custom_call.1} parent=63 // pred_fallthru
          _
        %s441 = sand.u32 %s39, 1
        %s442 = scalar_lea.sflag [#allocation3], %s441
        %s443 = sand.u32 %s39, 1
        %s444 = smul.addr %s443, 8
        %s445 = scalar_lea.vmem [#allocation2], %s444
        %p446 = pneg %p52
        %p447 = pneg %p49
        %p448 = pneg %p73
        %p449 = pneg %p70
        %p450 = pneg %p94
        %p451 = pneg %p91
        %p452 = pneg %p115
        %p453 = pneg %p112
        %p454 = pneg %p136
        %p455 = pneg %p133
        %p456 = pneg %p157
        %p457 = pneg %p154
        %p458 = pneg %p178
        %p459 = pneg %p175
        %p460 = pneg %p199
        %p461 = pneg %p196
        %p462 = pneg %p220
        %p463 = pneg %p217
        %p464 = pneg %p241
        %p465 = pneg %p238
        %p466 = pneg %p262
        %p467 = pneg %p259
        %p468 = pneg %p288
        %p469 = pneg %p285
        %s470 = sand.u32 %s275, 1
        %s471 = scalar_lea.sflag [#allocation4], %s470
        %s472 = sand.u32 %s275, 1
        %s473 = smul.addr %s472, 8
        %s474 = scalar_lea.vmem [#allocation13], %s473
        %v475 = vld [vmem:[%s416] sm:$0xff]
        %v476 = vld [vmem:[#allocation5] sm:$0xff]
        %v477 = vld [vmem:[#allocation5 + $0x8] sm:$0xff]
        %v478 = vld [vmem:[#allocation5 + $0x10] sm:$0xff]
        %v479 = vld [vmem:[#allocation5 + $0x18] sm:$0xff]
        %v480 = vld [vmem:[#allocation5 + $0x20] sm:$0xff]
        %v481 = vld [vmem:[#allocation5 + $0x28] sm:$0xff]
        %v482 = vld [vmem:[#allocation5 + $0x30] sm:$0xff]
        %v483 = vld [vmem:[#allocation5 + $0x38] sm:$0xff]
        %v484 = vld [vmem:[#allocation5 + $0x40] sm:$0xff]
        %v485 = vld [vmem:[#allocation5 + $0x48] sm:$0xff]
        %v486 = vld [vmem:[#allocation5 + $0x50] sm:$0xff]
        %v487 = vld [vmem:[#allocation5 + $0x58] sm:$0xff]
        %v488 = vld [vmem:[#allocation5 + $0x60] sm:$0xff]
        %v489 = vld [vmem:[#allocation5 + $0x68] sm:$0xff]
        %v490 = vld [vmem:[#allocation5 + $0x70] sm:$0xff]
        %v491 = vld [vmem:[#allocation5 + $0x78] sm:$0xff]
        %vm492 = vcmask 261120
        %v494 = vsel %vm492, %v475, 0
        %496 = vmatprep.subr.mxu0 0.0
        %497 = vmatpush1.msra.mxu0 0.0
        %498 = vmatprep.subr.mxu0 0.0
        %499 = vmatpush1.msra.mxu0 0.0
        %500 = vmatprep.subr.mxu0 0.0
        %501 = vmatpush1.msra.mxu0 0.0
        %502 = vmatprep.subr.mxu0 0.0
        %503 = vmatpush1.msra.mxu0 0.0
        %504 = vmatprep.subr.mxu0 0.0
        %505 = vmatpush1.msra.mxu0 0.0
        %506 = vmatprep.subr.mxu0 0.0
        %507 = vmatpush1.msra.mxu0 0.0
        %508 = vmatprep.subr.mxu0 0.0
        %509 = vmatpush1.msra.mxu0 0.0
        %510 = vmatprep.subr.mxu0 0.0
        %511 = vmatpush1.msra.mxu0 0.0
        %512 = vmatprep.subr.mxu0 0.0
        %513 = vmatpush1.msra.mxu0 0.0
        %514 = vmatprep.subr.mxu0 0.0
        %515 = vmatpush1.msra.mxu0 0.0
        %516 = vmatprep.subr.mxu0 0.0
        %517 = vmatpush1.msra.mxu0 0.0
        %518 = vmatprep.subr.mxu0 0.0
        %519 = vmatpush1.msra.mxu0 0.0
        %520 = vmatprep.subr.mxu0 %v489
        %521 = vmatpush1.msra.mxu0 %v488
        %522 = vmatprep.subr.mxu0 %v485
        %523 = vmatpush1.msra.mxu0 %v484
        %524 = vmatprep.subr.mxu0 %v481
        %525 = vmatpush1.msra.mxu0 %v480
        %526 = vmatprep.subr.mxu0 %v477
        %527 = vmatpush1.msra.mxu0 %v476
        %528 = vmatprep.subr.mxu0 0.0
        %529 = vmatpush2.msra.mxu0 0.0
        %530 = vmatprep.subr.mxu0 0.0
        %531 = vmatpush2.msra.mxu0 0.0
        %532 = vmatprep.subr.mxu0 0.0
        %533 = vmatpush2.msra.mxu0 0.0
        %534 = vmatprep.subr.mxu0 0.0
        %535 = vmatpush2.msra.mxu0 0.0
        %536 = vmatprep.subr.mxu0 0.0
        %537 = vmatpush2.msra.mxu0 0.0
        %538 = vmatprep.subr.mxu0 0.0
        %539 = vmatpush2.msra.mxu0 0.0
        %540 = vmatprep.subr.mxu0 0.0
        %541 = vmatpush2.msra.mxu0 0.0
        %542 = vmatprep.subr.mxu0 0.0
        %543 = vmatpush2.msra.mxu0 0.0
        %544 = vmatprep.subr.mxu0 0.0
        %545 = vmatpush2.msra.mxu0 0.0
        %546 = vmatprep.subr.mxu0 0.0
        %547 = vmatpush2.msra.mxu0 0.0
        %548 = vmatprep.subr.mxu0 0.0
        %549 = vmatpush2.msra.mxu0 0.0
        %550 = vmatprep.subr.mxu0 0.0
        %551 = vmatpush2.msra.mxu0 0.0
        %552 = vmatprep.subr.mxu0 0.0
        %553 = vmatpush2.msra.mxu0 0.0
        %554 = vmatprep.subr.mxu0 0.0
        %555 = vmatpush2.msra.mxu0 0.0
        %556 = vmatprep.subr.mxu0 0.0
        %557 = vmatpush2.msra.mxu0 0.0
        %558 = vmatprep.subr.mxu0 0.0
        %559 = vmatpush2.msra.mxu0 0.0
        %560 = vmatprep.mubr.f32.mxu0 0.0
        %561 = vmatmul.mubr.f32.gmra.mxu0 %v494
        %v562 = vpop.f32.mrf.mxu0
        %v563 = vadd.f32 0.0, %v562
        %v564 = vpop.f32.mrf.mxu0
        %v565 = vadd.f32 0.0, %v564
        %566 = vdwg.mxu0
        %567 = vmatprep.subr.mxu0 0.0
        %568 = vmatpush1.msra.mxu0 0.0
        %569 = vmatprep.subr.mxu0 0.0
        %570 = vmatpush1.msra.mxu0 0.0
        %571 = vmatprep.subr.mxu0 0.0
        %572 = vmatpush1.msra.mxu0 0.0
        %573 = vmatprep.subr.mxu0 0.0
        %574 = vmatpush1.msra.mxu0 0.0
        %575 = vmatprep.subr.mxu0 0.0
        %576 = vmatpush1.msra.mxu0 0.0
        %577 = vmatprep.subr.mxu0 0.0
        %578 = vmatpush1.msra.mxu0 0.0
        %579 = vmatprep.subr.mxu0 0.0
        %580 = vmatpush1.msra.mxu0 0.0
        %581 = vmatprep.subr.mxu0 0.0
        %582 = vmatpush1.msra.mxu0 0.0
        %583 = vmatprep.subr.mxu0 0.0
        %584 = vmatpush1.msra.mxu0 0.0
        %585 = vmatprep.subr.mxu0 0.0
        %586 = vmatpush1.msra.mxu0 0.0
        %587 = vmatprep.subr.mxu0 0.0
        %588 = vmatpush1.msra.mxu0 0.0
        %589 = vmatprep.subr.mxu0 0.0
        %590 = vmatpush1.msra.mxu0 0.0
        %591 = vmatprep.subr.mxu0 %v491
        %592 = vmatpush1.msra.mxu0 %v490
        %593 = vmatprep.subr.mxu0 %v487
        %594 = vmatpush1.msra.mxu0 %v486
        %595 = vmatprep.subr.mxu0 %v483
        %596 = vmatpush1.msra.mxu0 %v482
        %597 = vmatprep.subr.mxu0 %v479
        %598 = vmatpush1.msra.mxu0 %v478
        %599 = vmatprep.subr.mxu0 0.0
        %600 = vmatpush2.msra.mxu0 0.0
        %601 = vmatprep.subr.mxu0 0.0
        %602 = vmatpush2.msra.mxu0 0.0
        %603 = vmatprep.subr.mxu0 0.0
        %604 = vmatpush2.msra.mxu0 0.0
        %605 = vmatprep.subr.mxu0 0.0
        %606 = vmatpush2.msra.mxu0 0.0
        %607 = vmatprep.subr.mxu0 0.0
        %608 = vmatpush2.msra.mxu0 0.0
        %609 = vmatprep.subr.mxu0 0.0
        %610 = vmatpush2.msra.mxu0 0.0
        %611 = vmatprep.subr.mxu0 0.0
        %612 = vmatpush2.msra.mxu0 0.0
        %613 = vmatprep.subr.mxu0 0.0
        %614 = vmatpush2.msra.mxu0 0.0
        %615 = vmatprep.subr.mxu0 0.0
        %616 = vmatpush2.msra.mxu0 0.0
        %617 = vmatprep.subr.mxu0 0.0
        %618 = vmatpush2.msra.mxu0 0.0
        %619 = vmatprep.subr.mxu0 0.0
        %620 = vmatpush2.msra.mxu0 0.0
        %621 = vmatprep.subr.mxu0 0.0
        %622 = vmatpush2.msra.mxu0 0.0
        %623 = vmatprep.subr.mxu0 0.0
        %624 = vmatpush2.msra.mxu0 0.0
        %625 = vmatprep.subr.mxu0 0.0
        %626 = vmatpush2.msra.mxu0 0.0
        %627 = vmatprep.subr.mxu0 0.0
        %628 = vmatpush2.msra.mxu0 0.0
        %629 = vmatprep.subr.mxu0 0.0
        %630 = vmatpush2.msra.mxu0 0.0
        %631 = vmatprep.mubr.f32.mxu0 0.0
        %632 = vmatmul.mubr.f32.gmra.mxu0 %v494
        %v633 = vpop.f32.mrf.mxu0
        %v634 = vadd.f32 0.0, %v633
        %v635 = vpop.f32.mrf.mxu0
        %v636 = vadd.f32 0.0, %v635
        %637 = vdwg.mxu0
        %v638 = vld [vmem:[%s2] sm:$0x1]
        %v640 = vlaneseq
        %v641 = vshrl.u32 %v640, 7
        %v642 = vsub.s32 0, %v641
        %v643 = vrot.slane %v638, %v642
        %v645 = vadd.f32 %v563, %v643
        %v646 = vmax.f32 %v645, 0.0
        %v647 = vld [vmem:[#allocation7] sm:$0xff]
        %v648 = vld [vmem:[#allocation7 + $0x8] sm:$0xff]
        %v649 = vld [vmem:[#allocation7 + $0x10] sm:$0xff]
        %v650 = vld [vmem:[#allocation7 + $0x18] sm:$0xff]
        %v651 = vld [vmem:[#allocation7 + $0x20] sm:$0xff]
        %v652 = vld [vmem:[#allocation7 + $0x28] sm:$0xff]
        %v653 = vld [vmem:[#allocation7 + $0x30] sm:$0xff]
        %v654 = vld [vmem:[#allocation7 + $0x38] sm:$0xff]
        %v655 = vld [vmem:[#allocation7 + $0x40] sm:$0xff]
        %v656 = vld [vmem:[#allocation7 + $0x48] sm:$0xff]
        %v657 = vld [vmem:[#allocation7 + $0x50] sm:$0xff]
        %v658 = vld [vmem:[#allocation7 + $0x58] sm:$0xff]
        %v659 = vld [vmem:[#allocation7 + $0x60] sm:$0xff]
        %v660 = vld [vmem:[#allocation7 + $0x68] sm:$0xff]
        %v661 = vld [vmem:[#allocation7 + $0x70] sm:$0xff]
        %v662 = vld [vmem:[#allocation7 + $0x78] sm:$0xff]
        %663 = vmatprep.subr.mxu0 0.0
        %664 = vmatpush1.msra.mxu0 %v662
        %665 = vmatprep.subr.mxu0 0.0
        %666 = vmatpush1.msra.mxu0 %v661
        %667 = vmatprep.subr.mxu0 0.0
        %668 = vmatpush1.msra.mxu0 %v660
        %669 = vmatprep.subr.mxu0 0.0
        %670 = vmatpush1.msra.mxu0 %v659
        %671 = vmatprep.subr.mxu0 0.0
        %672 = vmatpush1.msra.mxu0 %v658
        %673 = vmatprep.subr.mxu0 0.0
        %674 = vmatpush1.msra.mxu0 %v657
        %675 = vmatprep.subr.mxu0 0.0
        %676 = vmatpush1.msra.mxu0 %v656
        %677 = vmatprep.subr.mxu0 0.0
        %678 = vmatpush1.msra.mxu0 %v655
        %679 = vmatprep.subr.mxu0 0.0
        %680 = vmatpush1.msra.mxu0 %v654
        %681 = vmatprep.subr.mxu0 0.0
        %682 = vmatpush1.msra.mxu0 %v653
        %683 = vmatprep.subr.mxu0 0.0
        %684 = vmatpush1.msra.mxu0 %v652
        %685 = vmatprep.subr.mxu0 0.0
        %686 = vmatpush1.msra.mxu0 %v651
        %687 = vmatprep.subr.mxu0 0.0
        %688 = vmatpush1.msra.mxu0 %v650
        %689 = vmatprep.subr.mxu0 0.0
        %690 = vmatpush1.msra.mxu0 %v649
        %691 = vmatprep.subr.mxu0 0.0
        %692 = vmatpush1.msra.mxu0 %v648
        %693 = vmatprep.subr.mxu0 0.0
        %694 = vmatpush1.msra.mxu0 %v647
        %695 = vmatprep.subr.mxu0 0.0
        %696 = vmatpush2.msra.mxu0 0.0
        %697 = vmatprep.subr.mxu0 0.0
        %698 = vmatpush2.msra.mxu0 0.0
        %699 = vmatprep.subr.mxu0 0.0
        %700 = vmatpush2.msra.mxu0 0.0
        %701 = vmatprep.subr.mxu0 0.0
        %702 = vmatpush2.msra.mxu0 0.0
        %703 = vmatprep.subr.mxu0 0.0
        %704 = vmatpush2.msra.mxu0 0.0
        %705 = vmatprep.subr.mxu0 0.0
        %706 = vmatpush2.msra.mxu0 0.0
        %707 = vmatprep.subr.mxu0 0.0
        %708 = vmatpush2.msra.mxu0 0.0
        %709 = vmatprep.subr.mxu0 0.0
        %710 = vmatpush2.msra.mxu0 0.0
        %711 = vmatprep.subr.mxu0 0.0
        %712 = vmatpush2.msra.mxu0 0.0
        %713 = vmatprep.subr.mxu0 0.0
        %714 = vmatpush2.msra.mxu0 0.0
        %715 = vmatprep.subr.mxu0 0.0
        %716 = vmatpush2.msra.mxu0 0.0
        %717 = vmatprep.subr.mxu0 0.0
        %718 = vmatpush2.msra.mxu0 0.0
        %719 = vmatprep.subr.mxu0 0.0
        %720 = vmatpush2.msra.mxu0 0.0
        %721 = vmatprep.subr.mxu0 0.0
        %722 = vmatpush2.msra.mxu0 0.0
        %723 = vmatprep.subr.mxu0 0.0
        %724 = vmatpush2.msra.mxu0 0.0
        %725 = vmatprep.subr.mxu0 0.0
        %726 = vmatpush2.msra.mxu0 0.0
        %727 = vmatprep.mubr.f32.mxu0 0.0
        %728 = vmatmul.mubr.f32.gmra.mxu0 %v646
        %v729 = vpop.f32.mrf.mxu0
        %v730 = vadd.f32 0.0, %v729
        %v731 = vpop.f32.mrf.mxu0
        %732 = vdwg.mxu0
        %v733 = vadd.f32 %v565, %v730
        %v734 = vld [vmem:[%s4] sm:$0x1]
        %v736 = vlaneseq
        %v737 = vshrl.u32 %v736, 7
        %v738 = vsub.s32 0, %v737
        %v739 = vrot.slane %v734, %v738
        %v741 = vadd.f32 %v733, %v739
        %v742 = vmax.f32 %v741, 0.0
        %v743 = vld [vmem:[#allocation8] sm:$0xff]
        %v744 = vld [vmem:[#allocation8 + $0x8] sm:$0xff]
        %v745 = vld [vmem:[#allocation8 + $0x10] sm:$0xff]
        %v746 = vld [vmem:[#allocation8 + $0x18] sm:$0xff]
        %v747 = vld [vmem:[#allocation8 + $0x20] sm:$0xff]
        %v748 = vld [vmem:[#allocation8 + $0x28] sm:$0xff]
        %v749 = vld [vmem:[#allocation8 + $0x30] sm:$0xff]
        %v750 = vld [vmem:[#allocation8 + $0x38] sm:$0xff]
        %v751 = vld [vmem:[#allocation8 + $0x40] sm:$0xff]
        %v752 = vld [vmem:[#allocation8 + $0x48] sm:$0xff]
        %v753 = vld [vmem:[#allocation8 + $0x50] sm:$0xff]
        %v754 = vld [vmem:[#allocation8 + $0x58] sm:$0xff]
        %v755 = vld [vmem:[#allocation8 + $0x60] sm:$0xff]
        %v756 = vld [vmem:[#allocation8 + $0x68] sm:$0xff]
        %v757 = vld [vmem:[#allocation8 + $0x70] sm:$0xff]
        %v758 = vld [vmem:[#allocation8 + $0x78] sm:$0xff]
        %759 = vmatprep.subr.mxu0 0.0
        %760 = vmatpush1.msra.mxu0 %v758
        %761 = vmatprep.subr.mxu0 0.0
        %762 = vmatpush1.msra.mxu0 %v757
        %763 = vmatprep.subr.mxu0 0.0
        %764 = vmatpush1.msra.mxu0 %v756
        %765 = vmatprep.subr.mxu0 0.0
        %766 = vmatpush1.msra.mxu0 %v755
        %767 = vmatprep.subr.mxu0 0.0
        %768 = vmatpush1.msra.mxu0 %v754
        %769 = vmatprep.subr.mxu0 0.0
        %770 = vmatpush1.msra.mxu0 %v753
        %771 = vmatprep.subr.mxu0 0.0
        %772 = vmatpush1.msra.mxu0 %v752
        %773 = vmatprep.subr.mxu0 0.0
        %774 = vmatpush1.msra.mxu0 %v751
        %775 = vmatprep.subr.mxu0 0.0
        %776 = vmatpush1.msra.mxu0 %v750
        %777 = vmatprep.subr.mxu0 0.0
        %778 = vmatpush1.msra.mxu0 %v749
        %779 = vmatprep.subr.mxu0 0.0
        %780 = vmatpush1.msra.mxu0 %v748
        %781 = vmatprep.subr.mxu0 0.0
        %782 = vmatpush1.msra.mxu0 %v747
        %783 = vmatprep.subr.mxu0 0.0
        %784 = vmatpush1.msra.mxu0 %v746
        %785 = vmatprep.subr.mxu0 0.0
        %786 = vmatpush1.msra.mxu0 %v745
        %787 = vmatprep.subr.mxu0 0.0
        %788 = vmatpush1.msra.mxu0 %v744
        %789 = vmatprep.subr.mxu0 0.0
        %790 = vmatpush1.msra.mxu0 %v743
        %791 = vmatprep.subr.mxu0 0.0
        %792 = vmatpush2.msra.mxu0 0.0
        %793 = vmatprep.subr.mxu0 0.0
        %794 = vmatpush2.msra.mxu0 0.0
        %795 = vmatprep.subr.mxu0 0.0
        %796 = vmatpush2.msra.mxu0 0.0
        %797 = vmatprep.subr.mxu0 0.0
        %798 = vmatpush2.msra.mxu0 0.0
        %799 = vmatprep.subr.mxu0 0.0
        %800 = vmatpush2.msra.mxu0 0.0
        %801 = vmatprep.subr.mxu0 0.0
        %802 = vmatpush2.msra.mxu0 0.0
        %803 = vmatprep.subr.mxu0 0.0
        %804 = vmatpush2.msra.mxu0 0.0
        %805 = vmatprep.subr.mxu0 0.0
        %806 = vmatpush2.msra.mxu0 0.0
        %807 = vmatprep.subr.mxu0 0.0
        %808 = vmatpush2.msra.mxu0 0.0
        %809 = vmatprep.subr.mxu0 0.0
        %810 = vmatpush2.msra.mxu0 0.0
        %811 = vmatprep.subr.mxu0 0.0
        %812 = vmatpush2.msra.mxu0 0.0
        %813 = vmatprep.subr.mxu0 0.0
        %814 = vmatpush2.msra.mxu0 0.0
        %815 = vmatprep.subr.mxu0 0.0
        %816 = vmatpush2.msra.mxu0 0.0
        %817 = vmatprep.subr.mxu0 0.0
        %818 = vmatpush2.msra.mxu0 0.0
        %819 = vmatprep.subr.mxu0 0.0
        %820 = vmatpush2.msra.mxu0 0.0
        %821 = vmatprep.subr.mxu0 0.0
        %822 = vmatpush2.msra.mxu0 0.0
        %823 = vmatprep.mubr.f32.mxu0 0.0
        %824 = vmatmul.mubr.f32.gmra.mxu0 %v742
        %v825 = vpop.f32.mrf.mxu0
        %v826 = vadd.f32 0.0, %v825
        %v827 = vpop.f32.mrf.mxu0
        %828 = vdwg.mxu0
        %v829 = vadd.f32 %v634, %v826
        %v830 = vld [vmem:[%s6] sm:$0x1]
        %v832 = vlaneseq
        %v833 = vshrl.u32 %v832, 7
        %v834 = vsub.s32 0, %v833
        %v835 = vrot.slane %v830, %v834
        %v837 = vadd.f32 %v829, %v835
        %v838 = vmax.f32 %v837, 0.0
        %v839 = vld [vmem:[#allocation10] sm:$0xff]
        %v840 = vld [vmem:[#allocation10 + $0x8] sm:$0xff]
        %v841 = vld [vmem:[#allocation10 + $0x10] sm:$0xff]
        %v842 = vld [vmem:[#allocation10 + $0x18] sm:$0xff]
        %v843 = vld [vmem:[#allocation10 + $0x20] sm:$0xff]
        %v844 = vld [vmem:[#allocation10 + $0x28] sm:$0xff]
        %v845 = vld [vmem:[#allocation10 + $0x30] sm:$0xff]
        %v846 = vld [vmem:[#allocation10 + $0x38] sm:$0xff]
        %v847 = vld [vmem:[#allocation10 + $0x40] sm:$0xff]
        %v848 = vld [vmem:[#allocation10 + $0x48] sm:$0xff]
        %v849 = vld [vmem:[#allocation10 + $0x50] sm:$0xff]
        %v850 = vld [vmem:[#allocation10 + $0x58] sm:$0xff]
        %v851 = vld [vmem:[#allocation10 + $0x60] sm:$0xff]
        %v852 = vld [vmem:[#allocation10 + $0x68] sm:$0xff]
        %v853 = vld [vmem:[#allocation10 + $0x70] sm:$0xff]
        %v854 = vld [vmem:[#allocation10 + $0x78] sm:$0xff]
        %855 = vmatprep.subr.mxu0 0.0
        %856 = vmatpush1.msra.mxu0 %v854
        %857 = vmatprep.subr.mxu0 0.0
        %858 = vmatpush1.msra.mxu0 %v853
        %859 = vmatprep.subr.mxu0 0.0
        %860 = vmatpush1.msra.mxu0 %v852
        %861 = vmatprep.subr.mxu0 0.0
        %862 = vmatpush1.msra.mxu0 %v851
        %863 = vmatprep.subr.mxu0 0.0
        %864 = vmatpush1.msra.mxu0 %v850
        %865 = vmatprep.subr.mxu0 0.0
        %866 = vmatpush1.msra.mxu0 %v849
        %867 = vmatprep.subr.mxu0 0.0
        %868 = vmatpush1.msra.mxu0 %v848
        %869 = vmatprep.subr.mxu0 0.0
        %870 = vmatpush1.msra.mxu0 %v847
        %871 = vmatprep.subr.mxu0 0.0
        %872 = vmatpush1.msra.mxu0 %v846
        %873 = vmatprep.subr.mxu0 0.0
        %874 = vmatpush1.msra.mxu0 %v845
        %875 = vmatprep.subr.mxu0 0.0
        %876 = vmatpush1.msra.mxu0 %v844
        %877 = vmatprep.subr.mxu0 0.0
        %878 = vmatpush1.msra.mxu0 %v843
        %879 = vmatprep.subr.mxu0 0.0
        %880 = vmatpush1.msra.mxu0 %v842
        %881 = vmatprep.subr.mxu0 0.0
        %882 = vmatpush1.msra.mxu0 %v841
        %883 = vmatprep.subr.mxu0 0.0
        %884 = vmatpush1.msra.mxu0 %v840
        %885 = vmatprep.subr.mxu0 0.0
        %886 = vmatpush1.msra.mxu0 %v839
        %887 = vmatprep.subr.mxu0 0.0
        %888 = vmatpush2.msra.mxu0 0.0
        %889 = vmatprep.subr.mxu0 0.0
        %890 = vmatpush2.msra.mxu0 0.0
        %891 = vmatprep.subr.mxu0 0.0
        %892 = vmatpush2.msra.mxu0 0.0
        %893 = vmatprep.subr.mxu0 0.0
        %894 = vmatpush2.msra.mxu0 0.0
        %895 = vmatprep.subr.mxu0 0.0
        %896 = vmatpush2.msra.mxu0 0.0
        %897 = vmatprep.subr.mxu0 0.0
        %898 = vmatpush2.msra.mxu0 0.0
        %899 = vmatprep.subr.mxu0 0.0
        %900 = vmatpush2.msra.mxu0 0.0
        %901 = vmatprep.subr.mxu0 0.0
        %902 = vmatpush2.msra.mxu0 0.0
        %903 = vmatprep.subr.mxu0 0.0
        %904 = vmatpush2.msra.mxu0 0.0
        %905 = vmatprep.subr.mxu0 0.0
        %906 = vmatpush2.msra.mxu0 0.0
        %907 = vmatprep.subr.mxu0 0.0
        %908 = vmatpush2.msra.mxu0 0.0
        %909 = vmatprep.subr.mxu0 0.0
        %910 = vmatpush2.msra.mxu0 0.0
        %911 = vmatprep.subr.mxu0 0.0
        %912 = vmatpush2.msra.mxu0 0.0
        %913 = vmatprep.subr.mxu0 0.0
        %914 = vmatpush2.msra.mxu0 0.0
        %915 = vmatprep.subr.mxu0 0.0
        %916 = vmatpush2.msra.mxu0 0.0
        %917 = vmatprep.subr.mxu0 0.0
        %918 = vmatpush2.msra.mxu0 0.0
        %919 = vmatprep.mubr.f32.mxu0 0.0
        %920 = vmatmul.mubr.f32.gmra.mxu0 %v838
        %v921 = vpop.f32.mrf.mxu0
        %v922 = vadd.f32 0.0, %v921
        %v923 = vpop.f32.mrf.mxu0
        %924 = vdwg.mxu0
        %v925 = vadd.f32 %v636, %v922
        %v926 = vld [vmem:[%s8] sm:$0x1]
        %v928 = vlaneseq
        %v929 = vshrl.u32 %v928, 7
        %v930 = vsub.s32 0, %v929
        %v931 = vrot.slane %v926, %v930
        %v933 = vadd.f32 %v925, %v931
        %v934 = vmax.f32 %v933, 0.0
        %v935 = vld [vmem:[#allocation11] sm:$0xff]
        %v936 = vld [vmem:[#allocation11 + $0x8] sm:$0xff]
        %v937 = vld [vmem:[#allocation11 + $0x10] sm:$0xff]
        %v938 = vld [vmem:[#allocation11 + $0x18] sm:$0xff]
        %v939 = vld [vmem:[#allocation11 + $0x20] sm:$0xff]
        %v940 = vld [vmem:[#allocation11 + $0x28] sm:$0xff]
        %v941 = vld [vmem:[#allocation11 + $0x30] sm:$0xff]
        %v942 = vld [vmem:[#allocation11 + $0x38] sm:$0xff]
        %v943 = vld [vmem:[#allocation11 + $0x40] sm:$0xff]
        %v944 = vld [vmem:[#allocation11 + $0x48] sm:$0xff]
        %v945 = vld [vmem:[#allocation11 + $0x50] sm:$0xff]
        %v946 = vld [vmem:[#allocation11 + $0x58] sm:$0xff]
        %v947 = vld [vmem:[#allocation11 + $0x60] sm:$0xff]
        %v948 = vld [vmem:[#allocation11 + $0x68] sm:$0xff]
        %v949 = vld [vmem:[#allocation11 + $0x70] sm:$0xff]
        %v950 = vld [vmem:[#allocation11 + $0x78] sm:$0xff]
        %v951 = vld [vmem:[#allocation11 + $0x80] sm:$0xff]
        %v952 = vld [vmem:[#allocation11 + $0x88] sm:$0xff]
        %v953 = vld [vmem:[#allocation11 + $0x90] sm:$0xff]
        %v954 = vld [vmem:[#allocation11 + $0x98] sm:$0xff]
        %v955 = vld [vmem:[#allocation11 + $0xa0] sm:$0xff]
        %v956 = vld [vmem:[#allocation11 + $0xa8] sm:$0xff]
        %v957 = vld [vmem:[#allocation11 + $0xb0] sm:$0xff]
        %v958 = vld [vmem:[#allocation11 + $0xb8] sm:$0xff]
        %v959 = vld [vmem:[#allocation11 + $0xc0] sm:$0xff]
        %v960 = vld [vmem:[#allocation11 + $0xc8] sm:$0xff]
        %v961 = vld [vmem:[#allocation11 + $0xd0] sm:$0xff]
        %v962 = vld [vmem:[#allocation11 + $0xd8] sm:$0xff]
        %v963 = vld [vmem:[#allocation11 + $0xe0] sm:$0xff]
        %v964 = vld [vmem:[#allocation11 + $0xe8] sm:$0xff]
        %v965 = vld [vmem:[#allocation11 + $0xf0] sm:$0xff]
        %v966 = vld [vmem:[#allocation11 + $0xf8] sm:$0xff]
        %v967 = vld [vmem:[#allocation11 + $0x100] sm:$0xff]
        %v968 = vld [vmem:[#allocation11 + $0x108] sm:$0xff]
        %v969 = vld [vmem:[#allocation11 + $0x110] sm:$0xff]
        %v970 = vld [vmem:[#allocation11 + $0x118] sm:$0xff]
        %v971 = vld [vmem:[#allocation11 + $0x120] sm:$0xff]
        %v972 = vld [vmem:[#allocation11 + $0x128] sm:$0xff]
        %v973 = vld [vmem:[#allocation11 + $0x130] sm:$0xff]
        %v974 = vld [vmem:[#allocation11 + $0x138] sm:$0xff]
        %v975 = vld [vmem:[#allocation11 + $0x140] sm:$0xff]
        %v976 = vld [vmem:[#allocation11 + $0x148] sm:$0xff]
        %v977 = vld [vmem:[#allocation11 + $0x150] sm:$0xff]
        %v978 = vld [vmem:[#allocation11 + $0x158] sm:$0xff]
        %v979 = vld [vmem:[#allocation11 + $0x160] sm:$0xff]
        %v980 = vld [vmem:[#allocation11 + $0x168] sm:$0xff]
        %v981 = vld [vmem:[#allocation11 + $0x170] sm:$0xff]
        %v982 = vld [vmem:[#allocation11 + $0x178] sm:$0xff]
        %v983 = vld [vmem:[#allocation11 + $0x180] sm:$0xff]
        %v984 = vld [vmem:[#allocation11 + $0x188] sm:$0xff]
        %v985 = vld [vmem:[#allocation11 + $0x190] sm:$0xff]
        %v986 = vld [vmem:[#allocation11 + $0x198] sm:$0xff]
        %v987 = vld [vmem:[#allocation11 + $0x1a0] sm:$0xff]
        %v988 = vld [vmem:[#allocation11 + $0x1a8] sm:$0xff]
        %v989 = vld [vmem:[#allocation11 + $0x1b0] sm:$0xff]
        %v990 = vld [vmem:[#allocation11 + $0x1b8] sm:$0xff]
        %v991 = vld [vmem:[#allocation11 + $0x1c0] sm:$0xff]
        %v992 = vld [vmem:[#allocation11 + $0x1c8] sm:$0xff]
        %v993 = vld [vmem:[#allocation11 + $0x1d0] sm:$0xff]
        %v994 = vld [vmem:[#allocation11 + $0x1d8] sm:$0xff]
        %v995 = vld [vmem:[#allocation11 + $0x1e0] sm:$0xff]
        %v996 = vld [vmem:[#allocation11 + $0x1e8] sm:$0xff]
        %v997 = vld [vmem:[#allocation11 + $0x1f0] sm:$0xff]
        %v998 = vld [vmem:[#allocation11 + $0x1f8] sm:$0xff]
        %v999 = vld [vmem:[%s10] sm:$0x1]
        %v1001 = vlaneseq
        %v1002 = vshrl.u32 %v1001, 7
        %v1003 = vsub.s32 0, %v1002
        %v1004 = vrot.slane %v999, %v1003
        %1006 = vmatprep.subr.mxu0 0.0
        %1007 = vmatpush1.msra.mxu0 %v950
        %1008 = vmatprep.subr.mxu0 0.0
        %1009 = vmatpush1.msra.mxu0 %v949
        %1010 = vmatprep.subr.mxu0 0.0
        %1011 = vmatpush1.msra.mxu0 %v948
        %1012 = vmatprep.subr.mxu0 0.0
        %1013 = vmatpush1.msra.mxu0 %v947
        %1014 = vmatprep.subr.mxu0 0.0
        %1015 = vmatpush1.msra.mxu0 %v946
        %1016 = vmatprep.subr.mxu0 0.0
        %1017 = vmatpush1.msra.mxu0 %v945
        %1018 = vmatprep.subr.mxu0 0.0
        %1019 = vmatpush1.msra.mxu0 %v944
        %1020 = vmatprep.subr.mxu0 0.0
        %1021 = vmatpush1.msra.mxu0 %v943
        %1022 = vmatprep.subr.mxu0 0.0
        %1023 = vmatpush1.msra.mxu0 %v942
        %1024 = vmatprep.subr.mxu0 0.0
        %1025 = vmatpush1.msra.mxu0 %v941
        %1026 = vmatprep.subr.mxu0 0.0
        %1027 = vmatpush1.msra.mxu0 %v940
        %1028 = vmatprep.subr.mxu0 0.0
        %1029 = vmatpush1.msra.mxu0 %v939
        %1030 = vmatprep.subr.mxu0 0.0
        %1031 = vmatpush1.msra.mxu0 %v938
        %1032 = vmatprep.subr.mxu0 0.0
        %1033 = vmatpush1.msra.mxu0 %v937
        %1034 = vmatprep.subr.mxu0 0.0
        %1035 = vmatpush1.msra.mxu0 %v936
        %1036 = vmatprep.subr.mxu0 0.0
        %1037 = vmatpush1.msra.mxu0 %v935
        %1038 = vmatprep.subr.mxu0 0.0
        %1039 = vmatpush2.msra.mxu0 %v966
        %1040 = vmatprep.subr.mxu0 0.0
        %1041 = vmatpush2.msra.mxu0 %v965
        %1042 = vmatprep.subr.mxu0 0.0
        %1043 = vmatpush2.msra.mxu0 %v964
        %1044 = vmatprep.subr.mxu0 0.0
        %1045 = vmatpush2.msra.mxu0 %v963
        %1046 = vmatprep.subr.mxu0 0.0
        %1047 = vmatpush2.msra.mxu0 %v962
        %1048 = vmatprep.subr.mxu0 0.0
        %1049 = vmatpush2.msra.mxu0 %v961
        %1050 = vmatprep.subr.mxu0 0.0
        %1051 = vmatpush2.msra.mxu0 %v960
        %1052 = vmatprep.subr.mxu0 0.0
        %1053 = vmatpush2.msra.mxu0 %v959
        %1054 = vmatprep.subr.mxu0 0.0
        %1055 = vmatpush2.msra.mxu0 %v958
        %1056 = vmatprep.subr.mxu0 0.0
        %1057 = vmatpush2.msra.mxu0 %v957
        %1058 = vmatprep.subr.mxu0 0.0
        %1059 = vmatpush2.msra.mxu0 %v956
        %1060 = vmatprep.subr.mxu0 0.0
        %1061 = vmatpush2.msra.mxu0 %v955
        %1062 = vmatprep.subr.mxu0 0.0
        %1063 = vmatpush2.msra.mxu0 %v954
        %1064 = vmatprep.subr.mxu0 0.0
        %1065 = vmatpush2.msra.mxu0 %v953
        %1066 = vmatprep.subr.mxu0 0.0
        %1067 = vmatpush2.msra.mxu0 %v952
        %1068 = vmatprep.subr.mxu0 0.0
        %1069 = vmatpush2.msra.mxu0 %v951
        %1070 = vmatprep.mubr.f32.mxu0 %v742
        %1071 = vmatmul.mubr.f32.gmra.mxu0 %v646
        %v1072 = vpop.f32.mrf.mxu0
        %v1073 = vadd.f32 %v1004, %v1072
        %v1074 = vpop.f32.mrf.mxu0
        %1075 = vdwg.mxu0
        %1076 = vmatprep.subr.mxu0 0.0
        %1077 = vmatpush1.msra.mxu0 %v982
        %1078 = vmatprep.subr.mxu0 0.0
        %1079 = vmatpush1.msra.mxu0 %v981
        %1080 = vmatprep.subr.mxu0 0.0
        %1081 = vmatpush1.msra.mxu0 %v980
        %1082 = vmatprep.subr.mxu0 0.0
        %1083 = vmatpush1.msra.mxu0 %v979
        %1084 = vmatprep.subr.mxu0 0.0
        %1085 = vmatpush1.msra.mxu0 %v978
        %1086 = vmatprep.subr.mxu0 0.0
        %1087 = vmatpush1.msra.mxu0 %v977
        %1088 = vmatprep.subr.mxu0 0.0
        %1089 = vmatpush1.msra.mxu0 %v976
        %1090 = vmatprep.subr.mxu0 0.0
        %1091 = vmatpush1.msra.mxu0 %v975
        %1092 = vmatprep.subr.mxu0 0.0
        %1093 = vmatpush1.msra.mxu0 %v974
        %1094 = vmatprep.subr.mxu0 0.0
        %1095 = vmatpush1.msra.mxu0 %v973
        %1096 = vmatprep.subr.mxu0 0.0
        %1097 = vmatpush1.msra.mxu0 %v972
        %1098 = vmatprep.subr.mxu0 0.0
        %1099 = vmatpush1.msra.mxu0 %v971
        %1100 = vmatprep.subr.mxu0 0.0
        %1101 = vmatpush1.msra.mxu0 %v970
        %1102 = vmatprep.subr.mxu0 0.0
        %1103 = vmatpush1.msra.mxu0 %v969
        %1104 = vmatprep.subr.mxu0 0.0
        %1105 = vmatpush1.msra.mxu0 %v968
        %1106 = vmatprep.subr.mxu0 0.0
        %1107 = vmatpush1.msra.mxu0 %v967
        %1108 = vmatprep.subr.mxu0 0.0
        %1109 = vmatpush2.msra.mxu0 %v998
        %1110 = vmatprep.subr.mxu0 0.0
        %1111 = vmatpush2.msra.mxu0 %v997
        %1112 = vmatprep.subr.mxu0 0.0
        %1113 = vmatpush2.msra.mxu0 %v996
        %1114 = vmatprep.subr.mxu0 0.0
        %1115 = vmatpush2.msra.mxu0 %v995
        %1116 = vmatprep.subr.mxu0 0.0
        %1117 = vmatpush2.msra.mxu0 %v994
        %1118 = vmatprep.subr.mxu0 0.0
        %1119 = vmatpush2.msra.mxu0 %v993
        %1120 = vmatprep.subr.mxu0 0.0
        %1121 = vmatpush2.msra.mxu0 %v992
        %1122 = vmatprep.subr.mxu0 0.0
        %1123 = vmatpush2.msra.mxu0 %v991
        %1124 = vmatprep.subr.mxu0 0.0
        %1125 = vmatpush2.msra.mxu0 %v990
        %1126 = vmatprep.subr.mxu0 0.0
        %1127 = vmatpush2.msra.mxu0 %v989
        %1128 = vmatprep.subr.mxu0 0.0
        %1129 = vmatpush2.msra.mxu0 %v988
        %1130 = vmatprep.subr.mxu0 0.0
        %1131 = vmatpush2.msra.mxu0 %v987
        %1132 = vmatprep.subr.mxu0 0.0
        %1133 = vmatpush2.msra.mxu0 %v986
        %1134 = vmatprep.subr.mxu0 0.0
        %1135 = vmatpush2.msra.mxu0 %v985
        %1136 = vmatprep.subr.mxu0 0.0
        %1137 = vmatpush2.msra.mxu0 %v984
        %1138 = vmatprep.subr.mxu0 0.0
        %1139 = vmatpush2.msra.mxu0 %v983
        %1140 = vmatprep.mubr.f32.mxu0 %v934
        %1141 = vmatmul.mubr.f32.gmra.mxu0 %v838
        %v1142 = vpop.f32.mrf.mxu0
        %v1143 = vadd.f32 %v1073, %v1142
        %v1144 = vpop.f32.mrf.mxu0
        %1145 = vdwg.mxu0
        %1146 = vst [vmem:[%s474] sm:$0xff] %v1143
        %s1147 = sand.u32 %s275, 1
        %s1148 = scalar_lea.sflag [#allocation4], %s1147
        %s1149 = sand.u32 %s275, 1
        %s1150 = smul.addr %s1149, 8
        %s1151 = scalar_lea.vmem [#allocation13], %s1150
        // Predicated region
        $region89: #{tpu_custom_call.1} parent=63 // pred_check
          %p1152 = pneg %p285
        $region90: #{tpu_custom_call.1} parent=63 // pred_check_branch
          %1154 = sbr.rel (%p1152) target = $region92
        $region91: #{tpu_custom_call.1} parent=63 // pred_region
          %s1156 = ssub.s32 128, 128
          %1157 = vsyncadd %s1148, %s1156
          %s1158 = smul.addr %s31, 128
          %s1159 = scalar_lea.hbm %s11, %s1158
          %s1161 = sshll.u32 %s1151, 4
          %s1162 = int_to_ptr.vmem [resolvable:$true] %s1161
          %1164 = dma.vmem_to_hbm [thread:$0]  %s1162, 128, %s1159, %s1148
        $region92: #{tpu_custom_call.1} parent=63 // pred_fallthru
          _
      $region64: #{tpu_custom_call.1} parent=5 // pred_fallthru
        _
      %p1165 = scmp.le.s32.totalorder 2, %s26
      // Predicated region
      $region93: #{tpu_custom_call.1} parent=5 // pred_check
        %p1166 = pneg %p1165
      $region94: #{tpu_custom_call.1} parent=5 // pred_check_branch
        %1168 = sbr.rel (%p1166) target = $region96
      $region95: #{tpu_custom_call.1} parent=5 // pred_region
        %s1169 = ssub.s32 %s26, 2
        // Predicated region
        $region97: #{tpu_custom_call.1} parent=95 // pred_check
          %p1170 = pneg %p291
        $region98: #{tpu_custom_call.1} parent=95 // pred_check_branch
          %1172 = sbr.rel (%p1170) target = $region100
        $region99: #{tpu_custom_call.1} parent=95 // pred_region
          %s1173 = sand.u32 %s276, 1
          %s1174 = scalar_lea.sflag [#allocation4], %s1173
          %s1175 = sand.u32 %s276, 1
          %s1176 = smul.addr %s1175, 8
          %s1177 = scalar_lea.vmem [#allocation13], %s1176
          %1178 = dma.done %s1174, 128
        $region100: #{tpu_custom_call.1} parent=95 // pred_fallthru
          _
      $region96: #{tpu_custom_call.1} parent=5 // pred_fallthru
        _
    $region6: #{tpu_custom_call.1} parent=1 // loop_footer
      %s30 = sadd.s32 1, %s26
    $region7: #{tpu_custom_call.1} parent=1 // loop_footer_branch
      %25 = sbr.rel target = $region3
    $region8: #{tpu_custom_call.1} parent=1 // loop_exit
      _
    %1179 = vsyncpa [#allocation3], 1
    %s1180 = scalar_lea.sflag [#allocation3], 1
    %1181 = vsyncpa %s1180, 1
    %1182 = vsyncpa [#allocation6], 1
    %1183 = vsyncpa [#allocation9], 1
    %1184 = vsyncpa [#allocation12], 1
    %1185 = vsyncpa [#allocation4], 1
    %s1186 = scalar_lea.sflag [#allocation4], 1
    %1187 = vsyncpa %s1186, 1

</llo_original>
